<compile_context>
chip_gen: v5e
topology: v5e:2x2
jax: 0.10.0
libtpu: 0.0.40
codegen_flags: <defaults>
</compile_context>

<pallas_src>
import functools
import math

import numpy as np
import jax
import jax.numpy as jnp
from jax import lax
from jax.experimental import pallas as pl
from jax.experimental.pallas import tpu as pltpu


# ---------------------------------------------------------------------------
# Kernel: one batch block, all output time steps, all output channels.
# ---------------------------------------------------------------------------
def _dwconv1d_kernel(x_ref, w_ref, o_ref, *, ks, stride, k_mult, cin, t_out):
    """Depthwise 1-D conv on one batch block.

    x_ref : (TB, rows, stride*cin)   channels-last, time folded by `stride`:
                                     (row q, lane slab r) == padded time q*stride + r
    w_ref : (ks*k_mult, cin)         row j*k_mult + k == weight[c*k_mult + k, 0, j]
    o_ref : (TB, t_out, k_mult*cin)  lane index k*cin + c == out channel c*k_mult + k
    """
    accs = [None] * k_mult
    for j in range(ks):                      # static unrolled tap loop
        q, r = divmod(j, stride)             # padded time = t*stride + j = (t+q)*stride + r
        xs = x_ref[:, q:q + t_out, :].astype(jnp.float32)   # (TB, t_out, stride*cin)
        if stride > 1:
            xs = xs[:, :, r * cin:(r + 1) * cin]            # static lane slab -> (TB, t_out, cin)
        for k in range(k_mult):
            row = j * k_mult + k
            w_row = w_ref[row:row + 1, :].astype(jnp.float32)   # (1, cin), broadcast over TB/t_out
            term = xs * w_row
            accs[k] = term if accs[k] is None else accs[k] + term
    y = accs[0] if k_mult == 1 else jnp.concatenate(accs, axis=-1)
    o_ref[...] = y.astype(o_ref.dtype)


# ---------------------------------------------------------------------------
# Wrapper: cheap layout plumbing (transpose / zero-pad / free reshape) + grid.
# ---------------------------------------------------------------------------
def depthwise_conv1d(x, weight, *, stride=1, padding=0,
                     block_bytes=12 * 1024 * 1024, max_batch_block=16):
    """Forward of DepthwiseConv1d.

    x      : (B, C, T)        float input  (batch, in_channels, time)
    weight : (C*K, 1, ks)     PyTorch Conv1d weight layout (groups=C, bias=False)
    returns: (B, C*K, T_out)
    """
    B, C, T = x.shape
    OC, in_per_group, ks = weight.shape
    assert in_per_group == 1 and OC % C == 0, "weight must be depthwise: (C*K, 1, ks)"
    K = OC // C
    s = int(stride)
    p = int(padding)
    assert T + 2 * p >= ks, "input too short for kernel size"
    t_out = (T + 2 * p - ks) // s + 1

    # channels-last so channels sit in the lane dimension inside the kernel
    x_cl = jnp.transpose(x, (0, 2, 1))                              # (B, T, C)
    # left pad = conv padding; right pad rounds total padded time up so it
    # (a) covers the conv padding and (b) folds evenly into `stride` lane slabs
    rows_needed = t_out + (ks - 1) // s
    rows_total = max(-(-(T + 2 * p) // s), rows_needed)
    total = rows_total * s
    x_pad = jnp.pad(x_cl, ((0, 0), (p, total - T - p), (0, 0)))
    x_r = x_pad.reshape(B, rows_total, s * C)                       # free contiguous reshape

    # weight: (C*K, 1, ks) -> (ks*K, C) with w_r[j*K+k, c] = weight[c*K+k, 0, j]
    w_r = jnp.transpose(weight.reshape(C, K, ks), (2, 1, 0)).reshape(ks * K, C)
    w_r = w_r.astype(x.dtype)

    # batch blocking: size TB from a conservative VMEM byte budget
    # (double-buffered input + output blocks; weight block is negligible)
    itemsize = jnp.dtype(x.dtype).itemsize
    per_seq = (rows_total * s * C + t_out * K * C) * itemsize * 2
    tb = int(max(1, min(B, max_batch_block, block_bytes // max(per_seq, 1))))
    nblk = -(-B // tb)
    bp = nblk * tb
    if bp > B:
        x_r = jnp.pad(x_r, ((0, bp - B), (0, 0), (0, 0)))

    kernel = functools.partial(_dwconv1d_kernel, ks=ks, stride=s, k_mult=K,
                               cin=C, t_out=t_out)

    out = pl.pallas_call(
        kernel,
        out_shape=jax.ShapeDtypeStruct((bp, t_out, K * C), x.dtype),
        grid=(nblk,),
        in_specs=[
            pl.BlockSpec((tb, rows_total, s * C), lambda b: (b, 0, 0)),
            pl.BlockSpec((ks * K, C), lambda b: (0, 0)),            # grid-invariant weight
        ],
        out_specs=pl.BlockSpec((tb, t_out, K * C), lambda b: (b, 0, 0)),
        compiler_params=pltpu.CompilerParams(
            # batch blocks are fully independent (no global statistics) ->
            # megacore-friendly on v7x, harmless on v5e/v6e.
            dimension_semantics=("parallel",)),
    )(x_r, w_r)

    # (bp, t_out, K*C) -> (B, C*K, t_out): kernel lane k*C + c == torch channel c*K + k
    y = out[:B].reshape(B, t_out, K, C)
    y = jnp.transpose(y, (0, 3, 2, 1)).reshape(B, C * K, t_out)
    return y


if __name__ == "__main__":
    # Small shapes consistent with the module: batch=2, in_channels=8, time=16,
    # depth multiplier K=2 (out_channels=16), kernel_size=3, stride=2, padding=1.
    B, C, T = 2, 8, 16
    K, ks, stride, padding = 2, 3, 2, 1

    key = jax.random.PRNGKey(0)
    kx, kw = jax.random.split(key)
    x = jax.random.normal(kx, (B, C, T), jnp.float32)
    weight = jax.random.normal(kw, (C * K, 1, ks), jnp.float32) * 0.5

    out = depthwise_conv1d(x, weight, stride=stride, padding=padding)
    jax.block_until_ready(out)

    # pure-JAX reference (identical semantics to torch.nn.Conv1d(groups=C, bias=False))
    ref = lax.conv_general_dilated(
        x, weight, window_strides=(stride,), padding=((padding, padding),),
        dimension_numbers=("NCH", "OIH", "NCH"), feature_group_count=C)
    np.testing.assert_allclose(np.asarray(out), np.asarray(ref), rtol=1e-5, atol=1e-5)
    print("KERNEL_OK")
</pallas_src>

<mosaic_0001>
module attributes {stable_mosaic.version = 11 : i64} {
  func.func @_dwconv1d_kernel(%arg0: i32, %arg1: memref<2x9x16xf32, #tpu.memory_space<vmem>>, %arg2: memref<6x8xf32, #tpu.memory_space<vmem>>, %arg3: memref<2x8x16xf32, #tpu.memory_space<vmem>>) attributes {dimension_semantics = [#tpu.dimension_semantics<parallel>], iteration_bounds = array<i64: 1>, scalar_prefetch = 0 : i64, scratch_operands = 0 : i64, tpu.core_type = #tpu.core_type<tc>, window_params = [{transform_indices = @transform_0, window_bounds = array<i64: 2, 9, 16>}, {pipeline_mode = #tpu.pipeline_mode<synchronous>, transform_indices = @transform_1, window_bounds = array<i64: 6, 8>}, {transform_indices = @transform_2, window_bounds = array<i64: 2, 8, 16>}]} {
    %c0 = arith.constant 0 : index
    %c0_0 = arith.constant 0 : index
    %c0_1 = arith.constant 0 : index
    %0 = vector.load %arg1[%c0, %c0_0, %c0_1] : memref<2x9x16xf32, #tpu.memory_space<vmem>>, vector<2x8x16xf32>
    %1 = vector.extract_strided_slice %0 {offsets = [0, 0, 0], sizes = [2, 8, 8], strides = [1, 1, 1]} : vector<2x8x16xf32> to vector<2x8x8xf32>
    %c0_2 = arith.constant 0 : index
    %c0_3 = arith.constant 0 : index
    %2 = vector.load %arg2[%c0_2, %c0_3] : memref<6x8xf32, #tpu.memory_space<vmem>>, vector<1x8xf32>
    %3 = vector.shape_cast %2 : vector<1x8xf32> to vector<1x1x8xf32>
    %4 = vector.broadcast %3 : vector<1x1x8xf32> to vector<2x8x8xf32>
    %5 = arith.mulf %1, %4 : vector<2x8x8xf32>
    %c1 = arith.constant 1 : index
    %c0_4 = arith.constant 0 : index
    %6 = vector.load %arg2[%c1, %c0_4] : memref<6x8xf32, #tpu.memory_space<vmem>>, vector<1x8xf32>
    %7 = vector.shape_cast %6 : vector<1x8xf32> to vector<1x1x8xf32>
    %8 = vector.broadcast %7 : vector<1x1x8xf32> to vector<2x8x8xf32>
    %9 = arith.mulf %1, %8 : vector<2x8x8xf32>
    %c0_5 = arith.constant 0 : index
    %c0_6 = arith.constant 0 : index
    %c0_7 = arith.constant 0 : index
    %10 = vector.load %arg1[%c0_5, %c0_6, %c0_7] : memref<2x9x16xf32, #tpu.memory_space<vmem>>, vector<2x8x16xf32>
    %11 = vector.extract_strided_slice %10 {offsets = [0, 0, 8], sizes = [2, 8, 8], strides = [1, 1, 1]} : vector<2x8x16xf32> to vector<2x8x8xf32>
    %c2 = arith.constant 2 : index
    %c0_8 = arith.constant 0 : index
    %12 = vector.load %arg2[%c2, %c0_8] : memref<6x8xf32, #tpu.memory_space<vmem>>, vector<1x8xf32>
    %13 = vector.shape_cast %12 : vector<1x8xf32> to vector<1x1x8xf32>
    %14 = vector.broadcast %13 : vector<1x1x8xf32> to vector<2x8x8xf32>
    %15 = arith.mulf %11, %14 : vector<2x8x8xf32>
    %16 = arith.addf %5, %15 : vector<2x8x8xf32>
    %c3 = arith.constant 3 : index
    %c0_9 = arith.constant 0 : index
    %17 = vector.load %arg2[%c3, %c0_9] : memref<6x8xf32, #tpu.memory_space<vmem>>, vector<1x8xf32>
    %18 = vector.shape_cast %17 : vector<1x8xf32> to vector<1x1x8xf32>
    %19 = vector.broadcast %18 : vector<1x1x8xf32> to vector<2x8x8xf32>
    %20 = arith.mulf %11, %19 : vector<2x8x8xf32>
    %21 = arith.addf %9, %20 : vector<2x8x8xf32>
    %c0_10 = arith.constant 0 : index
    %c1_11 = arith.constant 1 : index
    %c0_12 = arith.constant 0 : index
    %22 = vector.load %arg1[%c0_10, %c1_11, %c0_12] : memref<2x9x16xf32, #tpu.memory_space<vmem>>, vector<2x8x16xf32>
    %23 = vector.extract_strided_slice %22 {offsets = [0, 0, 0], sizes = [2, 8, 8], strides = [1, 1, 1]} : vector<2x8x16xf32> to vector<2x8x8xf32>
    %c4 = arith.constant 4 : index
    %c0_13 = arith.constant 0 : index
    %24 = vector.load %arg2[%c4, %c0_13] : memref<6x8xf32, #tpu.memory_space<vmem>>, vector<1x8xf32>
    %25 = vector.shape_cast %24 : vector<1x8xf32> to vector<1x1x8xf32>
    %26 = vector.broadcast %25 : vector<1x1x8xf32> to vector<2x8x8xf32>
    %27 = arith.mulf %23, %26 : vector<2x8x8xf32>
    %28 = arith.addf %16, %27 : vector<2x8x8xf32>
    %c5 = arith.constant 5 : index
    %c0_14 = arith.constant 0 : index
    %29 = vector.load %arg2[%c5, %c0_14] : memref<6x8xf32, #tpu.memory_space<vmem>>, vector<1x8xf32>
    %30 = vector.shape_cast %29 : vector<1x8xf32> to vector<1x1x8xf32>
    %31 = vector.broadcast %30 : vector<1x1x8xf32> to vector<2x8x8xf32>
    %32 = arith.mulf %23, %31 : vector<2x8x8xf32>
    %33 = arith.addf %21, %32 : vector<2x8x8xf32>
    %34 = tpu.concatenate %28, %33 in 2 : vector<2x8x8xf32>, vector<2x8x8xf32> -> vector<2x8x16xf32>
    %c0_15 = arith.constant 0 : index
    %c0_16 = arith.constant 0 : index
    %c0_17 = arith.constant 0 : index
    %35 = vector.load %arg3[%c0_15, %c0_16, %c0_17] : memref<2x8x16xf32, #tpu.memory_space<vmem>>, vector<2x8x16xf32>
    tpu.vector_store %arg3[%c0_15, %c0_16, %c0_17], %34 {strides = array<i32>} : memref<2x8x16xf32, #tpu.memory_space<vmem>>, vector<2x8x16xf32>,
    return
  }
  func.func @transform_0(%arg0: i32) -> (i32, i32, i32) {
    %c0_i32 = arith.constant 0 : i32
    %c0_i32_0 = arith.constant 0 : i32
    %c0_i32_1 = arith.constant 0 : i32
    return %arg0, %c0_i32, %c0_i32_0 : i32, i32, i32
  }
  func.func @transform_1(%arg0: i32) -> (i32, i32) {
    %c0_i32 = arith.constant 0 : i32
    %c0_i32_0 = arith.constant 0 : i32
    %c0_i32_1 = arith.constant 0 : i32
    return %c0_i32, %c0_i32_0 : i32, i32
  }
  func.func @transform_2(%arg0: i32) -> (i32, i32, i32) {
    %c0_i32 = arith.constant 0 : i32
    %c0_i32_0 = arith.constant 0 : i32
    %c0_i32_1 = arith.constant 0 : i32
    return %arg0, %c0_i32, %c0_i32_0 : i32, i32, i32
  }
}

</mosaic_0001>

<llo_original>
// kernel: tpu_custom_call.1
$region0: #{tpu_custom_call.1}
  #allocation0 [shape = 'u32[]', space=smem, size = 0x4, offset = 0x4, fixed_abs, tag = 'smem constant byte address 0x4 - core index']
  #allocation1 [shape = 'u32[72,128]{1,0:T(1,128)}', space=vmem, size = 0x9000, scoped, tag = 'internal scratch']
  %s0 = inlined_call_operand.vmem [shape: f32[2,9,16], index: 0, kind: input, shape index: {}]
  %s1 = inlined_call_operand.vmem [shape: f32[6,8], index: 1, kind: input, shape index: {}]
  %s2 = inlined_call_operand.hbm [shape: f32[2,8,16], index: 2, kind: output, shape index: {}]
  %s3 = sld [smem:[#allocation0]]
  $region18: #{tpu_custom_call.1} parent=0
    _
  %s5 = ssub.s32 1, %s3
  %s6 = scalar_select 0, %s5, %s3
  $region1: #{tpu_custom_call.1} parent=0
    #allocation2 [shape = 'u8[8192]{0}', space=vmem, size = 0x2000, scoped, tag = 'output window, operand 0, single buffered']
    #allocation3 [shape = 's32[1]{0}', space=sflag, size = 0x4, scoped, tag = 'scoped memory for tpu_custom_call.1']
    %7 = vsyncpa [#allocation3], 0
    // Predicated region
    $region2: #{tpu_custom_call.1} parent=1 // pred_check
      _
    $region3: #{tpu_custom_call.1} parent=1 // pred_check_branch
      %9 = sbr.rel (0) target = $region5
    $region4: #{tpu_custom_call.1} parent=1 // pred_region
      _
    $region5: #{tpu_custom_call.1} parent=1 // pred_fallthru
      _
    // Predicated region
    $region6: #{tpu_custom_call.1} parent=1 // pred_check
      _
    $region7: #{tpu_custom_call.1} parent=1 // pred_check_branch
      %11 = sbr.rel (0) target = $region9
    $region8: #{tpu_custom_call.1} parent=1 // pred_region
      _
    $region9: #{tpu_custom_call.1} parent=1 // pred_fallthru
      _
    %v12 = vld [vmem:[%s0] sm:$0xff]
    %v13 = vld [vmem:[%s0 + $0x10] sm:$0xff]
    %v14 = vld [vmem:[%s1] sm:$0x1]
    %v15 = vperm.slane %v14, 0
    %v16 = vmul.f32 %v12, %v15
    %v17 = vmul.f32 %v13, %v15
    %v18 = vld [vmem:[%s1 + $0x1] sm:$0x1]
    %v19 = vperm.slane %v18, 0
    %v20 = vmul.f32 %v12, %v19
    %v21 = vmul.f32 %v13, %v19
    %v22 = vld [vmem:[%s1 + $0x2] sm:$0x1]
    %v23 = vperm.slane %v22, 0
    %25 = vrot.lane.b32.xlu0 %v23, 8
    %v26 = vpop.permute.xlu0 %25
    %v28 = vmul.f32 %v12, %v26
    %v29 = vmul.f32 %v13, %v26
    %32 = vrot.lane.b32.xlu0 %v28, 120
    %v33 = vpop.permute.xlu0 %32
    %34 = vrot.lane.b32.xlu0 %v29, 120
    %v35 = vpop.permute.xlu0 %34
    %v38 = vadd.f32 %v16, %v33
    %v39 = vadd.f32 %v17, %v35
    %v40 = vld [vmem:[%s1 + $0x3] sm:$0x1]
    %v41 = vperm.slane %v40, 0
    %43 = vrot.lane.b32.xlu0 %v41, 8
    %v44 = vpop.permute.xlu0 %43
    %v46 = vmul.f32 %v12, %v44
    %v47 = vmul.f32 %v13, %v44
    %50 = vrot.lane.b32.xlu0 %v46, 120
    %v51 = vpop.permute.xlu0 %50
    %52 = vrot.lane.b32.xlu0 %v47, 120
    %v53 = vpop.permute.xlu0 %52
    %v56 = vadd.f32 %v20, %v51
    %v57 = vadd.f32 %v21, %v53
    %v58 = vld [vmem:[%s0 + $0x1] sm:$0xff]
    %v59 = vld [vmem:[%s0 + $0x11] sm:$0xff]
    %v60 = vld [vmem:[%s1 + $0x4] sm:$0x1]
    %v61 = vperm.slane %v60, 0
    %v62 = vmul.f32 %v58, %v61
    %v63 = vmul.f32 %v59, %v61
    %v64 = vadd.f32 %v38, %v62
    %v65 = vadd.f32 %v39, %v63
    %v66 = vld [vmem:[%s1 + $0x5] sm:$0x1]
    %v67 = vperm.slane %v66, 0
    %v68 = vmul.f32 %v58, %v67
    %v69 = vmul.f32 %v59, %v67
    %v70 = vadd.f32 %v56, %v68
    %v71 = vadd.f32 %v57, %v69
    %74 = vrot.lane.b32.xlu0 %v70, 8
    %v75 = vpop.permute.xlu0 %74
    %76 = vrot.lane.b32.xlu0 %v71, 8
    %v77 = vpop.permute.xlu0 %76
    %vm80 = vcmask 64512
    %v81 = vsel %vm80, %v64, %v75
    %v82 = vsel %vm80, %v65, %v77
    %vm83 = vcmask 130048
    %84 = vst.msk [vmem:[#allocation2] sm:$0xff] %vm83, %v81
    %85 = vst.msk [vmem:[#allocation2 + $0x8] sm:$0xff] %vm83, %v82
    // Predicated region
    $region10: #{tpu_custom_call.1} parent=1 // pred_check
      _
    $region11: #{tpu_custom_call.1} parent=1 // pred_check_branch
      %87 = sbr.rel (0) target = $region13
    $region12: #{tpu_custom_call.1} parent=1 // pred_region
      %89 = vsyncadd [#allocation3], 0
      %s90 = sshll.u32 [#allocation2], 4
      %s91 = int_to_ptr.vmem [resolvable:$true] %s90
      %s92 = sshll.u32 %s2, 4
      %s93 = int_to_ptr.hbm [resolvable:$true] %s92
      %98 = dma.vmem_to_hbm [thread:$0]  %s91, 256, %s93, [#allocation3], 128, 128, 8
    $region13: #{tpu_custom_call.1} parent=1 // pred_fallthru
      _
    // Predicated region
    $region14: #{tpu_custom_call.1} parent=1 // pred_check
      _
    $region15: #{tpu_custom_call.1} parent=1 // pred_check_branch
      %100 = sbr.rel (0) target = $region17
    $region16: #{tpu_custom_call.1} parent=1 // pred_region
      %102 = dma.done [#allocation3], 256
    $region17: #{tpu_custom_call.1} parent=1 // pred_fallthru
      _
    %103 = vsyncpa [#allocation3], 1

</llo_original>
